<compile_context>
chip_gen: v7x
topology: tpu7x:2x2x1
jax: 0.10.0
libtpu: 0.0.40
codegen_flags: <defaults>
</compile_context>

<pallas_src>
import jax
import jax.numpy as jnp
from jax.experimental import pallas as pl
from jax.experimental.pallas import tpu as pltpu


def _classifier_kernel(x_ref, w1_ref, b1_ref, w2_ref, b2_ref, out_ref):
    # Lane-dense (batch-on-lanes) formulation: all intermediates carry the batch tile on
    # the 128-wide lane axis; classes / hidden units live on the sublane axis.
    x_t = x_ref[...].T                                      # (in_dim, tb)  XLU transpose

    # fc1 + ReLU: (hidden, in) @ (in, tb) -> (hidden, tb), f32 MXU accumulation.
    h_t = jnp.dot(w1_ref[...], x_t, preferred_element_type=jnp.float32) + b1_ref[...]
    h_t = jnp.maximum(h_t, 0.0)

    # fc2: (C, hidden) @ (hidden, tb) -> (C, tb)
    l_t = jnp.dot(w2_ref[...], h_t, preferred_element_type=jnp.float32) + b2_ref[...]

    # Numerically stable softmax over the class (sublane) axis.
    m = jnp.max(l_t, axis=0, keepdims=True)                 # (1, tb)
    e = jnp.exp(l_t - m)                                    # (C, tb): lane-dense EUP work
    d = jnp.sum(e, axis=0, keepdims=True)                   # (1, tb)
    # EUP approximate reciprocal (its own VLIW slot) + one Newton step back to full f32
    # accuracy, on a (1, tb) row: tb/128 vregs instead of tb/8 for a (tb, 1) column.
    inv = pl.reciprocal(d, approx=True)
    inv = inv * (2.0 - d * inv)
    p_t = e * inv                                           # (C, tb)

    # Back to the module's (batch, classes) layout for the output block.
    # NOTE: for a partial last batch block the padded rows hold unspecified data; the
    # per-column softmax keeps them isolated from valid rows and Pallas masks the HBM
    # writeback, so results are unaffected (padding lanes may transiently hold inf/NaN).
    out_ref[...] = p_t.T.astype(out_ref.dtype)


def _round_up(x: int, m: int) -> int:
    return ((x + m - 1) // m) * m


def _choose_tile(batch: int, tile_b: int) -> int:
    """Batch rows processed per grid step."""
    tb = min(tile_b, batch)
    if tb >= batch:
        # One block covers the whole batch.  For large batches split in two so the
        # 'parallel' grid axis gives both v7x TensorCores work (no-op on v5e/v6e, 1 TC);
        # for small batches the extra per-step overhead is not worth it.
        if batch >= 4096:
            return min(batch, _round_up(_round_up(batch, 2) // 2, 256))
        return batch
    # Multi-step grid: a block that does not span the whole batch must have rows divisible
    # by 8; 256 keeps the lane-dense intermediates aligned to full 128-lane vregs.
    quantum = 256 if tb >= 256 else 8
    return max(quantum, (tb // quantum) * quantum)


def _vmem_limit_bytes(tb: int) -> int:
    # One (tb, C<=128) f32 block occupies tb*128*4 bytes of VMEM (lane padding).
    # Budget: x + out double-buffered (4 blocks) plus the in-kernel transpose / matmul
    # temporaries (a few more block-equivalents).  Clamp at 56 MiB so v7x (64 MiB
    # physical VMEM) keeps headroom; v5e/v6e have 128 MiB so this is always safe there.
    block = tb * 128 * 4
    return int(min(56 << 20, max(32 << 20, 10 * block)))


def improved_classifier_forward(x, w1, b1, w2, b2, *, tile_b=8192):
    """Forward pass of ImprovedClassifier.

    x : (B, input_dim) float32 (bf16 also accepted; compute stays f32)
    w1: (hidden_dim, input_dim)    -- PyTorch nn.Linear layout (out_features, in_features)
    b1: (hidden_dim,) or (hidden_dim, 1)
    w2: (num_classes, hidden_dim)
    b2: (num_classes,) or (num_classes, 1)
    Returns softmax probabilities, shape (B, num_classes), float32.
    """
    B, in_dim = x.shape
    hidden = w1.shape[0]
    num_classes = w2.shape[0]

    # Biases as (out, 1) columns: broadcast along the lane (batch) axis in the kernel.
    b1c = jnp.asarray(b1, jnp.float32).reshape(hidden, 1)
    b2c = jnp.asarray(b2, jnp.float32).reshape(num_classes, 1)

    tb = _choose_tile(B, tile_b)
    grid = (pl.cdiv(B, tb),)

    resident = lambda i: (0, 0)   # weights / biases: same block every grid step

    cost = pl.CostEstimate(
        flops=2 * B * (in_dim * hidden + hidden * num_classes),
        transcendentals=B * (num_classes + 1),               # exp per class + reciprocal
        bytes_accessed=(B * (in_dim + num_classes)
                        + hidden * (in_dim + 1)
                        + num_classes * (hidden + 1)) * 4,
    )

    return pl.pallas_call(
        _classifier_kernel,
        out_shape=jax.ShapeDtypeStruct((B, num_classes), jnp.float32),
        grid=grid,
        in_specs=[
            pl.BlockSpec((tb, in_dim), lambda i: (i, 0)),        # x: streamed by batch tile
            pl.BlockSpec((hidden, in_dim), resident),            # w1: VMEM-resident
            pl.BlockSpec((hidden, 1), resident),                 # b1
            pl.BlockSpec((num_classes, hidden), resident),       # w2
            pl.BlockSpec((num_classes, 1), resident),            # b2
        ],
        out_specs=pl.BlockSpec((tb, num_classes), lambda i: (i, 0)),
        compiler_params=pltpu.CompilerParams(
            dimension_semantics=("parallel",),                   # megacore / v7x 2-TC sharding
            vmem_limit_bytes=_vmem_limit_bytes(tb),
        ),
        cost_estimate=cost,
    )(x, w1.astype(jnp.float32), b1c, w2.astype(jnp.float32), b2c)


def init_params(key, input_dim=20, hidden_dim=64, num_classes=20):
    """Deterministic synthetic params in PyTorch nn.Linear layout / init."""
    k1, k2, k3, k4 = jax.random.split(key, 4)
    bound1 = 1.0 / (input_dim ** 0.5)
    bound2 = 1.0 / (hidden_dim ** 0.5)
    w1 = jax.random.uniform(k1, (hidden_dim, input_dim), jnp.float32, -bound1, bound1)
    b1 = jax.random.uniform(k2, (hidden_dim,), jnp.float32, -bound1, bound1)
    w2 = jax.random.uniform(k3, (num_classes, hidden_dim), jnp.float32, -bound2, bound2)
    b2 = jax.random.uniform(k4, (num_classes,), jnp.float32, -bound2, bound2)
    return w1, b1, w2, b2


if __name__ == "__main__":
    input_dim, hidden_dim, num_classes = 20, 64, 20
    batch = 512      # small test batch
    tile_b = 256     # forces a 2-step grid to exercise the pipelined / parallel batch axis

    key = jax.random.PRNGKey(0)
    kx, kp = jax.random.split(key)
    x = jax.random.normal(kx, (batch, input_dim), jnp.float32)
    w1, b1, w2, b2 = init_params(kp, input_dim, hidden_dim, num_classes)

    probs = improved_classifier_forward(x, w1, b1, w2, b2, tile_b=tile_b)
    probs = jax.block_until_ready(probs)

    # Pure-JAX reference (same math as the PyTorch module; weights in nn.Linear layout).
    h_ref = jnp.maximum(x @ w1.T + b1, 0.0)
    logits_ref = h_ref @ w2.T + b2
    probs_ref = jax.nn.softmax(logits_ref, axis=1)

    assert probs.shape == (batch, num_classes)
    assert bool(jnp.allclose(probs, probs_ref, atol=2e-4, rtol=2e-4))
    assert bool(jnp.allclose(jnp.sum(probs, axis=1), 1.0, atol=1e-4))

    print("KERNEL_OK")
</pallas_src>

<mosaic_0001>
module attributes {stable_mosaic.version = 11 : i64} {
  func.func @_classifier_kernel(%arg0: i32, %arg1: memref<256x20xf32, #tpu.memory_space<vmem>>, %arg2: memref<64x20xf32, #tpu.memory_space<vmem>>, %arg3: memref<64x1xf32, #tpu.memory_space<vmem>>, %arg4: memref<20x64xf32, #tpu.memory_space<vmem>>, %arg5: memref<20x1xf32, #tpu.memory_space<vmem>>, %arg6: memref<256x20xf32, #tpu.memory_space<vmem>>) attributes {dimension_semantics = [#tpu.dimension_semantics<parallel>], iteration_bounds = array<i64: 2>, scalar_prefetch = 0 : i64, scratch_operands = 0 : i64, tpu.core_type = #tpu.core_type<tc>, window_params = [{transform_indices = @transform_0, window_bounds = array<i64: 256, 20>}, {pipeline_mode = #tpu.pipeline_mode<synchronous>, transform_indices = @transform_1, window_bounds = array<i64: 64, 20>}, {pipeline_mode = #tpu.pipeline_mode<synchronous>, transform_indices = @transform_2, window_bounds = array<i64: 64, 1>}, {pipeline_mode = #tpu.pipeline_mode<synchronous>, transform_indices = @transform_3, window_bounds = array<i64: 20, 64>}, {pipeline_mode = #tpu.pipeline_mode<synchronous>, transform_indices = @transform_4, window_bounds = array<i64: 20, 1>}, {transform_indices = @transform_5, window_bounds = array<i64: 256, 20>}]} {
    %c0 = arith.constant 0 : index
    %c0_0 = arith.constant 0 : index
    %0 = vector.load %arg1[%c0, %c0_0] : memref<256x20xf32, #tpu.memory_space<vmem>>, vector<256x20xf32>
    %1 = tpu.transpose %0, [1, 0] : vector<256x20xf32> -> vector<20x256xf32>
    %c0_1 = arith.constant 0 : index
    %c0_2 = arith.constant 0 : index
    %2 = vector.load %arg2[%c0_1, %c0_2] : memref<64x20xf32, #tpu.memory_space<vmem>>, vector<64x20xf32>
    %cst = arith.constant dense<0.000000e+00> : vector<64x256xf32>
    %3 = tpu.matmul %2, %1, %cst {dimension_numbers = #tpu.dot_dimension_numbers<[1], [0], [0], [1], [0, 0, 1, 1], [], []>} : vector<64x20xf32>, vector<20x256xf32>, vector<64x256xf32> -> vector<64x256xf32>
    %c0_3 = arith.constant 0 : index
    %c0_4 = arith.constant 0 : index
    %4 = vector.load %arg3[%c0_3, %c0_4] : memref<64x1xf32, #tpu.memory_space<vmem>>, vector<64x1xf32>
    %5 = vector.broadcast %4 : vector<64x1xf32> to vector<64x256xf32>
    %6 = arith.addf %3, %5 : vector<64x256xf32>
    %cst_5 = arith.constant 0.000000e+00 : f32
    %7 = vector.broadcast %cst_5 : f32 to vector<64x256xf32>
    %8 = arith.maximumf %6, %7 : vector<64x256xf32>
    %c0_6 = arith.constant 0 : index
    %c0_7 = arith.constant 0 : index
    %9 = vector.load %arg4[%c0_6, %c0_7] : memref<20x64xf32, #tpu.memory_space<vmem>>, vector<20x64xf32>
    %cst_8 = arith.constant dense<0.000000e+00> : vector<20x256xf32>
    %10 = tpu.matmul %9, %8, %cst_8 {dimension_numbers = #tpu.dot_dimension_numbers<[1], [0], [0], [1], [0, 0, 1, 1], [], []>} : vector<20x64xf32>, vector<64x256xf32>, vector<20x256xf32> -> vector<20x256xf32>
    %c0_9 = arith.constant 0 : index
    %c0_10 = arith.constant 0 : index
    %11 = vector.load %arg5[%c0_9, %c0_10] : memref<20x1xf32, #tpu.memory_space<vmem>>, vector<20x1xf32>
    %12 = vector.broadcast %11 : vector<20x1xf32> to vector<20x256xf32>
    %13 = arith.addf %10, %12 : vector<20x256xf32>
    %cst_11 = arith.constant dense<0xFF800000> : vector<256xf32>
    %14 = vector.multi_reduction <maximumf>, %13, %cst_11 [0] : vector<20x256xf32> to vector<256xf32>
    %15 = vector.shape_cast %14 : vector<256xf32> to vector<1x256xf32>
    %16 = vector.broadcast %15 : vector<1x256xf32> to vector<20x256xf32>
    %17 = arith.subf %13, %16 : vector<20x256xf32>
    %18 = math.exp %17 : vector<20x256xf32>
    %cst_12 = arith.constant dense<0.000000e+00> : vector<256xf32>
    %19 = vector.multi_reduction <add>, %18, %cst_12 [0] : vector<20x256xf32> to vector<256xf32>
    %20 = vector.shape_cast %19 : vector<256xf32> to vector<1x256xf32>
    %21 = tpu.reciprocal %20 {approx = true} : vector<1x256xf32> -> vector<1x256xf32>
    %22 = arith.mulf %20, %21 : vector<1x256xf32>
    %cst_13 = arith.constant 2.000000e+00 : f32
    %23 = vector.broadcast %cst_13 : f32 to vector<1x256xf32>
    %24 = arith.subf %23, %22 : vector<1x256xf32>
    %25 = arith.mulf %21, %24 : vector<1x256xf32>
    %26 = vector.broadcast %25 : vector<1x256xf32> to vector<20x256xf32>
    %27 = arith.mulf %18, %26 : vector<20x256xf32>
    %28 = tpu.transpose %27, [1, 0] : vector<20x256xf32> -> vector<256x20xf32>
    %c0_14 = arith.constant 0 : index
    %c0_15 = arith.constant 0 : index
    %29 = vector.load %arg6[%c0_14, %c0_15] : memref<256x20xf32, #tpu.memory_space<vmem>>, vector<256x20xf32>
    tpu.vector_store %arg6[%c0_14, %c0_15], %28 {strides = array<i32>} : memref<256x20xf32, #tpu.memory_space<vmem>>, vector<256x20xf32>,
    return
  }
  func.func @transform_0(%arg0: i32) -> (i32, i32) {
    %c0_i32 = arith.constant 0 : i32
    %c0_i32_0 = arith.constant 0 : i32
    return %arg0, %c0_i32 : i32, i32
  }
  func.func @transform_1(%arg0: i32) -> (i32, i32) {
    %c0_i32 = arith.constant 0 : i32
    %c0_i32_0 = arith.constant 0 : i32
    %c0_i32_1 = arith.constant 0 : i32
    return %c0_i32, %c0_i32_0 : i32, i32
  }
  func.func @transform_2(%arg0: i32) -> (i32, i32) {
    %c0_i32 = arith.constant 0 : i32
    %c0_i32_0 = arith.constant 0 : i32
    %c0_i32_1 = arith.constant 0 : i32
    return %c0_i32, %c0_i32_0 : i32, i32
  }
  func.func @transform_3(%arg0: i32) -> (i32, i32) {
    %c0_i32 = arith.constant 0 : i32
    %c0_i32_0 = arith.constant 0 : i32
    %c0_i32_1 = arith.constant 0 : i32
    return %c0_i32, %c0_i32_0 : i32, i32
  }
  func.func @transform_4(%arg0: i32) -> (i32, i32) {
    %c0_i32 = arith.constant 0 : i32
    %c0_i32_0 = arith.constant 0 : i32
    %c0_i32_1 = arith.constant 0 : i32
    return %c0_i32, %c0_i32_0 : i32, i32
  }
  func.func @transform_5(%arg0: i32) -> (i32, i32) {
    %c0_i32 = arith.constant 0 : i32
    %c0_i32_0 = arith.constant 0 : i32
    return %arg0, %c0_i32 : i32, i32
  }
}

</mosaic_0001>

<llo_original>
// kernel: tpu_custom_call.1
$region0: #{tpu_custom_call.1}
  #allocation0 [shape = 'u32[]', space=smem, size = 0x4, offset = 0x4, fixed_abs, tag = 'smem constant byte address 0x4 - core index']
  #allocation1 [shape = 'u32[144,128]{1,0:T(1,128)}', space=vmem, size = 0x12000, scoped, tag = 'internal scratch']
  %s0 = inlined_call_operand.vmem [shape: f32[512,20], index: 0, kind: input, shape index: {}]
  %s1 = inlined_call_operand.vmem [shape: f32[64,20], index: 1, kind: input, shape index: {}]
  %s2 = inlined_call_operand.vmem [shape: f32[64,1], index: 2, kind: input, shape index: {}]
  %s3 = inlined_call_operand.vmem [shape: f32[20,64], index: 3, kind: input, shape index: {}]
  %s4 = inlined_call_operand.vmem [shape: f32[20,1], index: 4, kind: input, shape index: {}]
  %s5 = inlined_call_operand.vmem [shape: f32[512,20], index: 5, kind: output, shape index: {}]
  %s6 = sld [smem:[#allocation0]]
  $region53: #{tpu_custom_call.1} parent=0
    _
  %s8 = ssub.s32 1, %s6
  %s9 = scalar_select 0, %s8, %s6
  loop: start=0, step=1, limit=4
  $region2: #{tpu_custom_call.1} parent=0 // loop_pre_header
    _
  $region3: #{tpu_custom_call.1} parent=0 // loop_header
    %s11 = sphi 0, %s15
    %p12 = scmp.ge.s32.totalorder %s11, 4
    %s21 = sphi 0, %s23
    %s24 = sphi 0, %s21
    %s25 = sphi 0, %s24
    %s41 = sphi 0, %s25
    %s45 = sphi 0, %s45
    %s47 = sphi 0, %s45
    %s48 = sphi 0, %s47
    %s62 = sphi 0, %s48
    %s66 = sphi 0, %s66
    %s68 = sphi 0, %s66
    %s69 = sphi 0, %s68
    %s83 = sphi 0, %s69
    %s87 = sphi 0, %s87
    %s89 = sphi 0, %s87
    %s90 = sphi 0, %s89
    %s104 = sphi 0, %s90
    %s108 = sphi 0, %s108
    %s110 = sphi 0, %s108
    %s111 = sphi 0, %s110
    %s125 = sphi 0, %s111
    %s131 = sphi 0, %s133
    %s134 = sphi 0, %s131
    %s135 = sphi 0, %s134
    %s151 = sphi 0, %s135
  $region4: #{tpu_custom_call.1} parent=0 // loop_header_branch
    %14 = sbr.rel (%p12) target = $region8
  $region5: #{tpu_custom_call.1} parent=0 // loop_body
    %s16 = ssub.s32 %s11, 1
    %s17 = ssub.s32 %s11, 2
    %s18 = sadd.s32 %s11, 1
    %s19 = ssub.s32 %s11, %s18
    %p20 = scmp.eq.s32.totalorder %s19, 0
    %s22 = sadd.s32 %s21, 1
    %s23 = scalar_select %p20, %s21, %s22
    %p26 = pneg %p20
    %p27 = scmp.eq.s32.totalorder %s11, 1
    %p28 = por %p26, %p27
    %p29 = scmp.ne.s32.totalorder %s21, %s24
    %p30 = scmp.eq.s32.totalorder %s11, 0
    %p31 = por %p29, %p30
    %p32 = scmp.ne.s32.totalorder %s21, %s24
    %p33 = scmp.eq.s32.totalorder %s16, 1
    %p34 = por %p32, %p33
    %p35 = scmp.ne.s32.totalorder %s24, %s25
    %p36 = scmp.eq.s32.totalorder %s16, 0
    %p37 = por %p35, %p36
    %p38 = scmp.ne.s32.totalorder %s24, %s25
    %p39 = scmp.eq.s32.totalorder %s17, 1
    %p40 = por %p38, %p39
    %p42 = scmp.ne.s32.totalorder %s25, %s41
    %p43 = scmp.eq.s32.totalorder %s17, 0
    %p44 = por %p42, %p43
    %s46 = sadd.s32 %s45, 1
    %p49 = scmp.eq.s32.totalorder %s11, 1
    %p50 = scmp.ne.s32.totalorder %s45, %s47
    %p51 = scmp.eq.s32.totalorder %s11, 0
    %p52 = por %p50, %p51
    %p53 = scmp.ne.s32.totalorder %s45, %s47
    %p54 = scmp.eq.s32.totalorder %s16, 1
    %p55 = por %p53, %p54
    %p56 = scmp.ne.s32.totalorder %s47, %s48
    %p57 = scmp.eq.s32.totalorder %s16, 0
    %p58 = por %p56, %p57
    %p59 = scmp.ne.s32.totalorder %s47, %s48
    %p60 = scmp.eq.s32.totalorder %s17, 1
    %p61 = por %p59, %p60
    %p63 = scmp.ne.s32.totalorder %s48, %s62
    %p64 = scmp.eq.s32.totalorder %s17, 0
    %p65 = por %p63, %p64
    %s67 = sadd.s32 %s66, 1
    %p70 = scmp.eq.s32.totalorder %s11, 1
    %p71 = scmp.ne.s32.totalorder %s66, %s68
    %p72 = scmp.eq.s32.totalorder %s11, 0
    %p73 = por %p71, %p72
    %p74 = scmp.ne.s32.totalorder %s66, %s68
    %p75 = scmp.eq.s32.totalorder %s16, 1
    %p76 = por %p74, %p75
    %p77 = scmp.ne.s32.totalorder %s68, %s69
    %p78 = scmp.eq.s32.totalorder %s16, 0
    %p79 = por %p77, %p78
    %p80 = scmp.ne.s32.totalorder %s68, %s69
    %p81 = scmp.eq.s32.totalorder %s17, 1
    %p82 = por %p80, %p81
    %p84 = scmp.ne.s32.totalorder %s69, %s83
    %p85 = scmp.eq.s32.totalorder %s17, 0
    %p86 = por %p84, %p85
    %s88 = sadd.s32 %s87, 1
    %p91 = scmp.eq.s32.totalorder %s11, 1
    %p92 = scmp.ne.s32.totalorder %s87, %s89
    %p93 = scmp.eq.s32.totalorder %s11, 0
    %p94 = por %p92, %p93
    %p95 = scmp.ne.s32.totalorder %s87, %s89
    %p96 = scmp.eq.s32.totalorder %s16, 1
    %p97 = por %p95, %p96
    %p98 = scmp.ne.s32.totalorder %s89, %s90
    %p99 = scmp.eq.s32.totalorder %s16, 0
    %p100 = por %p98, %p99
    %p101 = scmp.ne.s32.totalorder %s89, %s90
    %p102 = scmp.eq.s32.totalorder %s17, 1
    %p103 = por %p101, %p102
    %p105 = scmp.ne.s32.totalorder %s90, %s104
    %p106 = scmp.eq.s32.totalorder %s17, 0
    %p107 = por %p105, %p106
    %s109 = sadd.s32 %s108, 1
    %p112 = scmp.eq.s32.totalorder %s11, 1
    %p113 = scmp.ne.s32.totalorder %s108, %s110
    %p114 = scmp.eq.s32.totalorder %s11, 0
    %p115 = por %p113, %p114
    %p116 = scmp.ne.s32.totalorder %s108, %s110
    %p117 = scmp.eq.s32.totalorder %s16, 1
    %p118 = por %p116, %p117
    %p119 = scmp.ne.s32.totalorder %s110, %s111
    %p120 = scmp.eq.s32.totalorder %s16, 0
    %p121 = por %p119, %p120
    %p122 = scmp.ne.s32.totalorder %s110, %s111
    %p123 = scmp.eq.s32.totalorder %s17, 1
    %p124 = por %p122, %p123
    %p126 = scmp.ne.s32.totalorder %s111, %s125
    %p127 = scmp.eq.s32.totalorder %s17, 0
    %p128 = por %p126, %p127
    %s129 = ssub.s32 %s11, %s18
    %p130 = scmp.eq.s32.totalorder %s129, 0
    %s132 = sadd.s32 %s131, 1
    %s133 = scalar_select %p130, %s131, %s132
    %p136 = pneg %p130
    %p137 = scmp.eq.s32.totalorder %s11, 1
    %p138 = por %p136, %p137
    %p139 = scmp.ne.s32.totalorder %s131, %s134
    %p140 = scmp.eq.s32.totalorder %s11, 0
    %p141 = por %p139, %p140
    %p142 = scmp.ne.s32.totalorder %s131, %s134
    %p143 = scmp.eq.s32.totalorder %s16, 1
    %p144 = por %p142, %p143
    %p145 = scmp.ne.s32.totalorder %s134, %s135
    %p146 = scmp.eq.s32.totalorder %s16, 0
    %p147 = por %p145, %p146
    %p148 = scmp.ne.s32.totalorder %s134, %s135
    %p149 = scmp.eq.s32.totalorder %s17, 1
    %p150 = por %p148, %p149
    %p152 = scmp.ne.s32.totalorder %s135, %s151
    %p153 = scmp.eq.s32.totalorder %s17, 0
    %p154 = por %p152, %p153
    %p155 = scmp.le.s32.totalorder 1, %s11
    %p156 = scmp.lt.s32.totalorder %s11, 3
    %p157 = pnand %p155, %p156
    %p158 = pneg %p157
    // Predicated region
    $region9: #{tpu_custom_call.1} parent=5 // pred_check
      _
    $region10: #{tpu_custom_call.1} parent=5 // pred_check_branch
      %160 = sbr.rel (%p157) target = $region12
    $region11: #{tpu_custom_call.1} parent=5 // pred_region
      %s161 = ssub.s32 %s11, 1
      // Predicated region
      $region13: #{tpu_custom_call.1} parent=11 // pred_check
        %p162 = pneg %p58
      $region14: #{tpu_custom_call.1} parent=11 // pred_check_branch
        %164 = sbr.rel (%p162) target = $region16
      $region15: #{tpu_custom_call.1} parent=11 // pred_region
        _
      $region16: #{tpu_custom_call.1} parent=11 // pred_fallthru
        _
      // Predicated region
      $region17: #{tpu_custom_call.1} parent=11 // pred_check
        %p165 = pneg %p79
      $region18: #{tpu_custom_call.1} parent=11 // pred_check_branch
        %167 = sbr.rel (%p165) target = $region20
      $region19: #{tpu_custom_call.1} parent=11 // pred_region
        _
      $region20: #{tpu_custom_call.1} parent=11 // pred_fallthru
        _
      // Predicated region
      $region21: #{tpu_custom_call.1} parent=11 // pred_check
        %p168 = pneg %p100
      $region22: #{tpu_custom_call.1} parent=11 // pred_check_branch
        %170 = sbr.rel (%p168) target = $region24
      $region23: #{tpu_custom_call.1} parent=11 // pred_region
        _
      $region24: #{tpu_custom_call.1} parent=11 // pred_fallthru
        _
      // Predicated region
      $region25: #{tpu_custom_call.1} parent=11 // pred_check
        %p171 = pneg %p121
      $region26: #{tpu_custom_call.1} parent=11 // pred_check_branch
        %173 = sbr.rel (%p171) target = $region28
      $region27: #{tpu_custom_call.1} parent=11 // pred_region
        _
      $region28: #{tpu_custom_call.1} parent=11 // pred_fallthru
        _
    $region12: #{tpu_custom_call.1} parent=5 // pred_fallthru
      _
    %p174 = scmp.lt.s32.totalorder %s11, 2
    // Predicated region
    $region29: #{tpu_custom_call.1} parent=5 // pred_check
      %p175 = pneg %p174
    $region30: #{tpu_custom_call.1} parent=5 // pred_check_branch
      %177 = sbr.rel (%p175) target = $region32
    $region31: #{tpu_custom_call.1} parent=5 // pred_region
      // Predicated region
      $region33: #{tpu_custom_call.1} parent=31 // pred_check
        %p178 = pneg %p31
      $region34: #{tpu_custom_call.1} parent=31 // pred_check_branch
        %180 = sbr.rel (%p178) target = $region36
      $region35: #{tpu_custom_call.1} parent=31 // pred_region
        %s181 = smul.u32 32, %s11
        %p182 = scmp.lt.s32.totalorder %s181, 63
        %s183 = scalar_select %p182, %s181, 63
        %s184 = smul.addr %s183, 8
        %s185 = scalar_lea.vmem %s0, %s184
        %s186 = smul.u32 32, %s11
      $region36: #{tpu_custom_call.1} parent=31 // pred_fallthru
        _
    $region32: #{tpu_custom_call.1} parent=5 // pred_fallthru
      _
    %p187 = scmp.le.s32.totalorder 1, %s11
    %p188 = scmp.lt.s32.totalorder %s11, 3
    %p189 = pnand %p187, %p188
    %p190 = pneg %p189
    // Predicated region
    $region37: #{tpu_custom_call.1} parent=5 // pred_check
      _
    $region38: #{tpu_custom_call.1} parent=5 // pred_check_branch
      %192 = sbr.rel (%p189) target = $region40
    $region39: #{tpu_custom_call.1} parent=5 // pred_region
      %s193 = ssub.s32 %s11, 1
      %s194 = smul.u32 32, %s16
      %p195 = scmp.lt.s32.totalorder %s194, 63
      %s196 = scalar_select %p195, %s194, 63
      %s197 = smul.addr %s196, 8
      %s198 = scalar_lea.vmem %s0, %s197
      %p199 = pneg %p37
      %p200 = pneg %p34
      %p201 = pneg %p58
      %p202 = pneg %p55
      %p203 = pneg %p79
      %p204 = pneg %p76
      %p205 = pneg %p100
      %p206 = pneg %p97
      %p207 = pneg %p121
      %p208 = pneg %p118
      %p209 = pneg %p147
      %p210 = pneg %p144
      %s211 = smul.u32 32, %s16
      %p212 = scmp.lt.s32.totalorder %s211, 63
      %s213 = scalar_select %p212, %s211, 63
      %s214 = smul.addr %s213, 8
      %s215 = scalar_lea.vmem %s5, %s214
      %s216 = smul.u32 32, %s16
      %p217 = scmp.lt.s32.totalorder %s216, 63
      %s218 = scalar_select %p217, %s216, 63
      %s219 = smul.addr %s218, 8
      %s220 = scalar_lea.vmem %s0, %s219
      %s221 = smul.u32 32, %s16
      %s222 = smul.u32 32, %s16
      %p223 = scmp.lt.s32.totalorder %s222, 63
      %s224 = scalar_select %p223, %s222, 63
      %s225 = smul.addr %s224, 8
      %s226 = scalar_lea.vmem %s5, %s225
      %s227 = smul.u32 32, %s16
      %v228 = vld [vmem:[%s220] sm:$0xff]
      %v229 = vld [vmem:[%s220 + $0x8] sm:$0xff]
      %v230 = vld [vmem:[%s220 + $0x10] sm:$0xff]
      %v231 = vld [vmem:[%s220 + $0x18] sm:$0xff]
      %v232 = vld [vmem:[%s220 + $0x20] sm:$0xff]
      %v233 = vld [vmem:[%s220 + $0x28] sm:$0xff]
      %v234 = vld [vmem:[%s220 + $0x30] sm:$0xff]
      %v235 = vld [vmem:[%s220 + $0x38] sm:$0xff]
      %v236 = vld [vmem:[%s220 + $0x40] sm:$0xff]
      %v237 = vld [vmem:[%s220 + $0x48] sm:$0xff]
      %v238 = vld [vmem:[%s220 + $0x50] sm:$0xff]
      %v239 = vld [vmem:[%s220 + $0x58] sm:$0xff]
      %v240 = vld [vmem:[%s220 + $0x60] sm:$0xff]
      %v241 = vld [vmem:[%s220 + $0x68] sm:$0xff]
      %v242 = vld [vmem:[%s220 + $0x70] sm:$0xff]
      %v243 = vld [vmem:[%s220 + $0x78] sm:$0xff]
      %v244 = vld [vmem:[%s220 + $0x80] sm:$0xff]
      %v245 = vld [vmem:[%s220 + $0x88] sm:$0xff]
      %v246 = vld [vmem:[%s220 + $0x90] sm:$0xff]
      %v247 = vld [vmem:[%s220 + $0x98] sm:$0xff]
      %v248 = vld [vmem:[%s220 + $0xa0] sm:$0xff]
      %v249 = vld [vmem:[%s220 + $0xa8] sm:$0xff]
      %v250 = vld [vmem:[%s220 + $0xb0] sm:$0xff]
      %v251 = vld [vmem:[%s220 + $0xb8] sm:$0xff]
      %v252 = vld [vmem:[%s220 + $0xc0] sm:$0xff]
      %v253 = vld [vmem:[%s220 + $0xc8] sm:$0xff]
      %v254 = vld [vmem:[%s220 + $0xd0] sm:$0xff]
      %v255 = vld [vmem:[%s220 + $0xd8] sm:$0xff]
      %v256 = vld [vmem:[%s220 + $0xe0] sm:$0xff]
      %v257 = vld [vmem:[%s220 + $0xe8] sm:$0xff]
      %v258 = vld [vmem:[%s220 + $0xf0] sm:$0xff]
      %v259 = vld [vmem:[%s220 + $0xf8] sm:$0xff]
      %v260 = vld [vmem:[%s1] sm:$0xff]
      %v261 = vld [vmem:[%s1 + $0x8] sm:$0xff]
      %v262 = vld [vmem:[%s1 + $0x10] sm:$0xff]
      %v263 = vld [vmem:[%s1 + $0x18] sm:$0xff]
      %v264 = vld [vmem:[%s1 + $0x20] sm:$0xff]
      %v265 = vld [vmem:[%s1 + $0x28] sm:$0xff]
      %v266 = vld [vmem:[%s1 + $0x30] sm:$0xff]
      %v267 = vld [vmem:[%s1 + $0x38] sm:$0xff]
      %v268 = vld [vmem:[%s2] sm:$0xff]
      %v269 = vld [vmem:[%s2 + $0x8] sm:$0xff]
      %v270 = vld [vmem:[%s2 + $0x10] sm:$0xff]
      %v271 = vld [vmem:[%s2 + $0x18] sm:$0xff]
      %v272 = vld [vmem:[%s2 + $0x20] sm:$0xff]
      %v273 = vld [vmem:[%s2 + $0x28] sm:$0xff]
      %v274 = vld [vmem:[%s2 + $0x30] sm:$0xff]
      %v275 = vld [vmem:[%s2 + $0x38] sm:$0xff]
      %277 = vset.pattern.permute.xlu0 0
      %278 = vperm.xlu0 %277, %v268
      %v279 = vpop.permute.xlu0 %278
      %282 = vset.pattern.permute.xlu0 0
      %283 = vperm.xlu0 %282, %v269
      %v284 = vpop.permute.xlu0 %283
      %287 = vset.pattern.permute.xlu0 0
      %288 = vperm.xlu0 %287, %v270
      %v289 = vpop.permute.xlu0 %288
      %292 = vset.pattern.permute.xlu0 0
      %293 = vperm.xlu0 %292, %v271
      %v294 = vpop.permute.xlu0 %293
      %297 = vset.pattern.permute.xlu0 0
      %298 = vperm.xlu0 %297, %v272
      %v299 = vpop.permute.xlu0 %298
      %302 = vset.pattern.permute.xlu0 0
      %303 = vperm.xlu0 %302, %v273
      %v304 = vpop.permute.xlu0 %303
      %307 = vset.pattern.permute.xlu0 0
      %308 = vperm.xlu0 %307, %v274
      %v309 = vpop.permute.xlu0 %308
      %312 = vset.pattern.permute.xlu0 0
      %313 = vperm.xlu0 %312, %v275
      %v314 = vpop.permute.xlu0 %313
      %vm316 = vcmask 162816
      %v318 = vsel %vm316, %v260, 0
      %v321 = vsel %vm316, %v261, 0
      %v324 = vsel %vm316, %v262, 0
      %v327 = vsel %vm316, %v263, 0
      %v330 = vsel %vm316, %v264, 0
      %v333 = vsel %vm316, %v265, 0
      %v336 = vsel %vm316, %v266, 0
      %v339 = vsel %vm316, %v267, 0
      %v342 = vsel %vm316, %v228, 0
      %v345 = vsel %vm316, %v229, 0
      %v348 = vsel %vm316, %v230, 0
      %v351 = vsel %vm316, %v231, 0
      %v354 = vsel %vm316, %v232, 0
      %v357 = vsel %vm316, %v233, 0
      %v360 = vsel %vm316, %v234, 0
      %v363 = vsel %vm316, %v235, 0
      %v366 = vsel %vm316, %v236, 0
      %v369 = vsel %vm316, %v237, 0
      %v372 = vsel %vm316, %v238, 0
      %v375 = vsel %vm316, %v239, 0
      %v378 = vsel %vm316, %v240, 0
      %v381 = vsel %vm316, %v241, 0
      %v384 = vsel %vm316, %v242, 0
      %v387 = vsel %vm316, %v243, 0
      %v390 = vsel %vm316, %v244, 0
      %v393 = vsel %vm316, %v245, 0
      %v396 = vsel %vm316, %v246, 0
      %v399 = vsel %vm316, %v247, 0
      %v402 = vsel %vm316, %v248, 0
      %v405 = vsel %vm316, %v249, 0
      %v408 = vsel %vm316, %v250, 0
      %v411 = vsel %vm316, %v251, 0
      %v414 = vsel %vm316, %v252, 0
      %v417 = vsel %vm316, %v253, 0
      %v420 = vsel %vm316, %v254, 0
      %v423 = vsel %vm316, %v255, 0
      %v426 = vsel %vm316, %v256, 0
      %v429 = vsel %vm316, %v257, 0
      %v432 = vsel %vm316, %v258, 0
      %v435 = vsel %vm316, %v259, 0
      %437 = vmatprep.subr.mxu0 0.0
      %438 = vmatpush1.xpose.msra.mxu0 %v342
      %439 = vmatprep.subr.mxu0 0.0
      %440 = vmatpush1.xpose.msra.mxu0 %v345
      %441 = vmatprep.subr.mxu0 0.0
      %442 = vmatpush1.xpose.msra.mxu0 %v348
      %443 = vmatprep.subr.mxu0 0.0
      %444 = vmatpush1.xpose.msra.mxu0 %v351
      %445 = vmatprep.subr.mxu0 0.0
      %446 = vmatpush1.xpose.msra.mxu0 %v354
      %447 = vmatprep.subr.mxu0 0.0
      %448 = vmatpush1.xpose.msra.mxu0 %v357
      %449 = vmatprep.subr.mxu0 0.0
      %450 = vmatpush1.xpose.msra.mxu0 %v360
      %451 = vmatprep.subr.mxu0 0.0
      %452 = vmatpush1.xpose.msra.mxu0 %v363
      %453 = vmatprep.subr.mxu0 0.0
      %454 = vmatpush1.xpose.msra.mxu0 %v366
      %455 = vmatprep.subr.mxu0 0.0
      %456 = vmatpush1.xpose.msra.mxu0 %v369
      %457 = vmatprep.subr.mxu0 0.0
      %458 = vmatpush1.xpose.msra.mxu0 %v372
      %459 = vmatprep.subr.mxu0 0.0
      %460 = vmatpush1.xpose.msra.mxu0 %v375
      %461 = vmatprep.subr.mxu0 0.0
      %462 = vmatpush1.xpose.msra.mxu0 %v378
      %463 = vmatprep.subr.mxu0 0.0
      %464 = vmatpush1.xpose.msra.mxu0 %v381
      %465 = vmatprep.subr.mxu0 0.0
      %466 = vmatpush1.xpose.msra.mxu0 %v384
      %467 = vmatprep.subr.mxu0 0.0
      %468 = vmatpush1.xpose.msra.mxu0 %v387
      %469 = vmatprep.subr.mxu0 0.0
      %470 = vmatpush1.xpose.msra.mxu0 %v390
      %471 = vmatprep.subr.mxu0 0.0
      %472 = vmatpush1.xpose.msra.mxu0 %v393
      %473 = vmatprep.subr.mxu0 0.0
      %474 = vmatpush1.xpose.msra.mxu0 %v396
      %475 = vmatprep.subr.mxu0 0.0
      %476 = vmatpush1.xpose.msra.mxu0 %v399
      %477 = vmatprep.subr.mxu0 0.0
      %478 = vmatpush1.xpose.msra.mxu0 %v402
      %479 = vmatprep.subr.mxu0 0.0
      %480 = vmatpush1.xpose.msra.mxu0 %v405
      %481 = vmatprep.subr.mxu0 0.0
      %482 = vmatpush1.xpose.msra.mxu0 %v408
      %483 = vmatprep.subr.mxu0 0.0
      %484 = vmatpush1.xpose.msra.mxu0 %v411
      %485 = vmatprep.subr.mxu0 0.0
      %486 = vmatpush1.xpose.msra.mxu0 %v414
      %487 = vmatprep.subr.mxu0 0.0
      %488 = vmatpush1.xpose.msra.mxu0 %v417
      %489 = vmatprep.subr.mxu0 0.0
      %490 = vmatpush1.xpose.msra.mxu0 %v420
      %491 = vmatprep.subr.mxu0 0.0
      %492 = vmatpush1.xpose.msra.mxu0 %v423
      %493 = vmatprep.subr.mxu0 0.0
      %494 = vmatpush1.xpose.msra.mxu0 %v426
      %495 = vmatprep.subr.mxu0 0.0
      %496 = vmatpush1.xpose.msra.mxu0 %v429
      %497 = vmatprep.subr.mxu0 0.0
      %498 = vmatpush1.xpose.msra.mxu0 %v432
      %499 = vmatprep.subr.mxu0 0.0
      %500 = vmatpush1.xpose.msra.mxu0 %v435
      %501 = vmatprep.mubr.f32.mxu0 0.0
      %502 = vmatmul.mubr.f32.gmra.mrb[0].mxu0 %v318
      %v503 = vpop.f32.mrb[0].mxu0
      %v504 = vadd.f32 %v279, %v503
      %v505 = vpop.f32.mrb[0].mxu0
      %v506 = vadd.f32 %v279, %v505
      %507 = vmatprep.mubr.f32.mxu0 0.0
      %508 = vmatmul.mubr.f32.gmra.mrb[0].mxu0 %v321
      %v509 = vpop.f32.mrb[0].mxu0
      %v510 = vadd.f32 %v284, %v509
      %v511 = vpop.f32.mrb[0].mxu0
      %v512 = vadd.f32 %v284, %v511
      %513 = vmatprep.mubr.f32.mxu0 0.0
      %514 = vmatmul.mubr.f32.gmra.mrb[0].mxu0 %v324
      %v515 = vpop.f32.mrb[0].mxu0
      %v516 = vadd.f32 %v289, %v515
      %v517 = vpop.f32.mrb[0].mxu0
      %v518 = vadd.f32 %v289, %v517
      %519 = vmatprep.mubr.f32.mxu0 0.0
      %520 = vmatmul.mubr.f32.gmra.mrb[0].mxu0 %v327
      %v521 = vpop.f32.mrb[0].mxu0
      %v522 = vadd.f32 %v294, %v521
      %v523 = vpop.f32.mrb[0].mxu0
      %v524 = vadd.f32 %v294, %v523
      %525 = vmatprep.mubr.f32.mxu0 0.0
      %526 = vmatmul.mubr.f32.gmra.mrb[0].mxu0 %v330
      %v527 = vpop.f32.mrb[0].mxu0
      %v528 = vadd.f32 %v299, %v527
      %v529 = vpop.f32.mrb[0].mxu0
      %v530 = vadd.f32 %v299, %v529
      %531 = vmatprep.mubr.f32.mxu0 0.0
      %532 = vmatmul.mubr.f32.gmra.mrb[0].mxu0 %v333
      %v533 = vpop.f32.mrb[0].mxu0
      %v534 = vadd.f32 %v304, %v533
      %v535 = vpop.f32.mrb[0].mxu0
      %v536 = vadd.f32 %v304, %v535
      %537 = vmatprep.mubr.f32.mxu0 0.0
      %538 = vmatmul.mubr.f32.gmra.mrb[0].mxu0 %v336
      %v539 = vpop.f32.mrb[0].mxu0
      %v540 = vadd.f32 %v309, %v539
      %v541 = vpop.f32.mrb[0].mxu0
      %v542 = vadd.f32 %v309, %v541
      %543 = vmatprep.mubr.f32.mxu0 0.0
      %544 = vmatmul.mubr.f32.gmra.mrb[0].mxu0 %v339
      %v545 = vpop.f32.mrb[0].mxu0
      %v546 = vadd.f32 %v314, %v545
      %v547 = vpop.f32.mrb[0].mxu0
      %v548 = vadd.f32 %v314, %v547
      %549 = vdwg.mxu0
      %v550 = vmax.f32 %v504, 0.0
      %v551 = vmax.f32 %v506, 0.0
      %v552 = vmax.f32 %v510, 0.0
      %v553 = vmax.f32 %v512, 0.0
      %v554 = vmax.f32 %v516, 0.0
      %v555 = vmax.f32 %v518, 0.0
      %v556 = vmax.f32 %v522, 0.0
      %v557 = vmax.f32 %v524, 0.0
      %v558 = vmax.f32 %v528, 0.0
      %v559 = vmax.f32 %v530, 0.0
      %v560 = vmax.f32 %v534, 0.0
      %v561 = vmax.f32 %v536, 0.0
      %v562 = vmax.f32 %v540, 0.0
      %v563 = vmax.f32 %v542, 0.0
      %v564 = vmax.f32 %v546, 0.0
      %v565 = vmax.f32 %v548, 0.0
      %v566 = vld [vmem:[%s3] sm:$0xff]
      %v567 = vld [vmem:[%s3 + $0x8] sm:$0xff]
      %v568 = vld [vmem:[%s3 + $0x10] sm:$0xf]
      %v569 = vld [vmem:[%s4] sm:$0xff]
      %v570 = vld [vmem:[%s4 + $0x8] sm:$0xff]
      %v571 = vld [vmem:[%s4 + $0x10] sm:$0xf]
      %573 = vset.pattern.permute.xlu0 0
      %574 = vperm.xlu0 %573, %v569
      %v575 = vpop.permute.xlu0 %574
      %578 = vset.pattern.permute.xlu0 0
      %579 = vperm.xlu0 %578, %v570
      %v580 = vpop.permute.xlu0 %579
      %583 = vset.pattern.permute.xlu0 0
      %584 = vperm.xlu0 %583, %v571
      %v585 = vpop.permute.xlu0 %584
      %vm587 = vcmask 523264
      %v589 = vsel %vm587, %v566, 0
      %v592 = vsel %vm587, %v567, 0
      %v595 = vsel %vm587, %v568, 0
      %597 = vmatprep.subr.mxu0 %v551
      %598 = vmatpush1.msra.mxu0 %v550
      %599 = vmatprep.subr.mxu0 %v553
      %600 = vmatpush1.msra.mxu0 %v552
      %601 = vmatprep.subr.mxu0 %v555
      %602 = vmatpush1.msra.mxu0 %v554
      %603 = vmatprep.subr.mxu0 %v557
      %604 = vmatpush1.msra.mxu0 %v556
      %605 = vmatprep.subr.mxu0 %v559
      %606 = vmatpush1.msra.mxu0 %v558
      %607 = vmatprep.subr.mxu0 %v561
      %608 = vmatpush1.msra.mxu0 %v560
      %609 = vmatprep.subr.mxu0 %v563
      %610 = vmatpush1.msra.mxu0 %v562
      %611 = vmatprep.subr.mxu0 %v565
      %612 = vmatpush1.msra.mxu0 %v564
      %613 = vmatprep.subr.mxu0 0.0
      %614 = vmatpush1.msra.mxu0 0.0
      %615 = vmatprep.subr.mxu0 0.0
      %616 = vmatpush1.msra.mxu0 0.0
      %617 = vmatprep.subr.mxu0 0.0
      %618 = vmatpush1.msra.mxu0 0.0
      %619 = vmatprep.subr.mxu0 0.0
      %620 = vmatpush1.msra.mxu0 0.0
      %621 = vmatprep.subr.mxu0 0.0
      %622 = vmatpush1.msra.mxu0 0.0
      %623 = vmatprep.subr.mxu0 0.0
      %624 = vmatpush1.msra.mxu0 0.0
      %625 = vmatprep.subr.mxu0 0.0
      %626 = vmatpush1.msra.mxu0 0.0
      %627 = vmatprep.subr.mxu0 0.0
      %628 = vmatpush1.msra.mxu0 0.0
      %629 = vmatprep.subr.mxu0 0.0
      %630 = vmatpush1.msra.mxu0 0.0
      %631 = vmatprep.subr.mxu0 0.0
      %632 = vmatpush1.msra.mxu0 0.0
      %633 = vmatprep.subr.mxu0 0.0
      %634 = vmatpush1.msra.mxu0 0.0
      %635 = vmatprep.subr.mxu0 0.0
      %636 = vmatpush1.msra.mxu0 0.0
      %637 = vmatprep.subr.mxu0 0.0
      %638 = vmatpush1.msra.mxu0 0.0
      %639 = vmatprep.subr.mxu0 0.0
      %640 = vmatpush1.msra.mxu0 0.0
      %641 = vmatprep.subr.mxu0 0.0
      %642 = vmatpush1.msra.mxu0 0.0
      %643 = vmatprep.subr.mxu0 0.0
      %644 = vmatpush1.msra.mxu0 0.0
      %645 = vmatprep.subr.mxu0 0.0
      %646 = vmatpush1.msra.mxu0 0.0
      %647 = vmatprep.subr.mxu0 0.0
      %648 = vmatpush1.msra.mxu0 0.0
      %649 = vmatprep.subr.mxu0 0.0
      %650 = vmatpush1.msra.mxu0 0.0
      %651 = vmatprep.subr.mxu0 0.0
      %652 = vmatpush1.msra.mxu0 0.0
      %653 = vmatprep.subr.mxu0 0.0
      %654 = vmatpush1.msra.mxu0 0.0
      %655 = vmatprep.subr.mxu0 0.0
      %656 = vmatpush1.msra.mxu0 0.0
      %657 = vmatprep.subr.mxu0 0.0
      %658 = vmatpush1.msra.mxu0 0.0
      %659 = vmatprep.subr.mxu0 0.0
      %660 = vmatpush1.msra.mxu0 0.0
      %661 = vmatprep.mubr.f32.mxu0 0.0
      %662 = vmatmul.mubr.f32.gmra.mrb[0].mxu0 %v589
      %v663 = vpop.f32.mrb[0].mxu0
      %v664 = vadd.f32 %v575, %v663
      %v665 = vpop.f32.mrb[0].mxu0
      %v666 = vadd.f32 %v575, %v665
      %667 = vmatprep.mubr.f32.mxu0 0.0
      %668 = vmatmul.mubr.f32.gmra.mrb[0].mxu0 %v592
      %v669 = vpop.f32.mrb[0].mxu0
      %v670 = vadd.f32 %v580, %v669
      %v671 = vpop.f32.mrb[0].mxu0
      %v672 = vadd.f32 %v580, %v671
      %673 = vmatprep.mubr.f32.mxu0 0.0
      %674 = vmatmul.mubr.f32.gmra.mrb[0].mxu0 %v595
      %v675 = vpop.f32.mrb[0].mxu0
      %v676 = vadd.f32 %v585, %v675
      %v677 = vpop.f32.mrb[0].mxu0
      %v678 = vadd.f32 %v585, %v677
      %679 = vdwg.mxu0
      %vm680 = vcmask 1043456
      %v681 = vsel %vm680, %v676, -inf
      %v682 = vmax.f32 %v664, %v681
      %v683 = vmax.f32 %v682, %v670
      %v684 = vrot.slane %v683, 4
      %v685 = vmax.f32 %v683, %v684
      %v686 = vrot.slane %v685, 2
      %v687 = vmax.f32 %v685, %v686
      %v688 = vrot.slane %v687, 1
      %v689 = vmax.f32 %v687, %v688
      %v690 = vsel %vm680, %v678, -inf
      %v691 = vmax.f32 %v666, %v690
      %v692 = vmax.f32 %v691, %v672
      %v693 = vrot.slane %v692, 4
      %v694 = vmax.f32 %v692, %v693
      %v695 = vrot.slane %v694, 2
      %v696 = vmax.f32 %v694, %v695
      %v697 = vrot.slane %v696, 1
      %v698 = vmax.f32 %v696, %v697
      %v699 = vsub.f32 %v664, %v689
      %v700 = vsub.f32 %v666, %v698
      %v701 = vsub.f32 %v670, %v689
      %v702 = vsub.f32 %v672, %v698
      %v703 = vsub.f32 %v676, %v689
      %v704 = vsub.f32 %v678, %v698
      %v705 = vmul.f32 %v699, 1.442695
      %v706 = vpow.pop %v705
      %v707 = vmul.f32 %v700, 1.442695
      %v708 = vpow.pop %v707
      %v709 = vmul.f32 %v701, 1.442695
      %v710 = vpow.pop %v709
      %v711 = vmul.f32 %v702, 1.442695
      %v712 = vpow.pop %v711
      %v713 = vmul.f32 %v703, 1.442695
      %v714 = vpow.pop %v713
      %v715 = vmul.f32 %v704, 1.442695
      %v716 = vpow.pop %v715
      %v717 = vadd.f32 %v706, %v710
      %v718 = vsel %vm680, %v714, 0.0
      %v719 = vadd.f32 %v717, %v718
      %v720 = vrot.slane %v719, 4
      %v721 = vadd.f32 %v719, %v720
      %v722 = vrot.slane %v721, 2
      %v723 = vadd.f32 %v721, %v722
      %v724 = vrot.slane %v723, 1
      %v725 = vadd.f32 %v723, %v724
      %v726 = vadd.f32 %v708, %v712
      %v727 = vsel %vm680, %v716, 0.0
      %v728 = vadd.f32 %v726, %v727
      %v729 = vrot.slane %v728, 4
      %v730 = vadd.f32 %v728, %v729
      %v731 = vrot.slane %v730, 2
      %v732 = vadd.f32 %v730, %v731
      %v733 = vrot.slane %v732, 1
      %v734 = vadd.f32 %v732, %v733
      %v735 = vrcp.pop %v725
      %v736 = vrcp.pop %v734
      %v737 = vmul.f32 %v725, %v735
      %v738 = vmul.f32 %v734, %v736
      %v739 = vsub.f32 2.0, %v737
      %v740 = vsub.f32 2.0, %v738
      %v741 = vmul.f32 %v735, %v739
      %v742 = vmul.f32 %v736, %v740
      %v743 = vmul.f32 %v706, %v741
      %v744 = vmul.f32 %v708, %v742
      %v745 = vmul.f32 %v710, %v741
      %v746 = vmul.f32 %v712, %v742
      %v747 = vmul.f32 %v714, %v741
      %v748 = vmul.f32 %v716, %v742
      %749 = vxpose.xlu0.b32.start [1/16] %v743, 128
      %750 = vxpose.xlu0.b32.cont [2/16] %v745, 128
      %751 = vxpose.xlu0.b32.cont [3/16] %v747, 128
      %752 = vxpose.xlu0.b32.cont [4/16] 0.0, 128
      %753 = vxpose.xlu0.b32.cont [5/16] 0.0, 128
      %754 = vxpose.xlu0.b32.cont [6/16] 0.0, 128
      %755 = vxpose.xlu0.b32.cont [7/16] 0.0, 128
      %756 = vxpose.xlu0.b32.cont [8/16] 0.0, 128
      %757 = vxpose.xlu0.b32.cont [9/16] 0.0, 128
      %758 = vxpose.xlu0.b32.cont [10/16] 0.0, 128
      %759 = vxpose.xlu0.b32.cont [11/16] 0.0, 128
      %760 = vxpose.xlu0.b32.cont [12/16] 0.0, 128
      %761 = vxpose.xlu0.b32.cont [13/16] 0.0, 128
      %762 = vxpose.xlu0.b32.cont [14/16] 0.0, 128
      %763 = vxpose.xlu0.b32.cont [15/16] 0.0, 128
      %764 = vxpose.xlu0.b32.end [16/16] 0.0, 128
      %v765 = vpop.trf.xlu0
      %v766 = vpop.trf.xlu0
      %v767 = vpop.trf.xlu0
      %v768 = vpop.trf.xlu0
      %v769 = vpop.trf.xlu0
      %v770 = vpop.trf.xlu0
      %v771 = vpop.trf.xlu0
      %v772 = vpop.trf.xlu0
      %v773 = vpop.trf.xlu0
      %v774 = vpop.trf.xlu0
      %v775 = vpop.trf.xlu0
      %v776 = vpop.trf.xlu0
      %v777 = vpop.trf.xlu0
      %v778 = vpop.trf.xlu0
      %v779 = vpop.trf.xlu0
      %v780 = vpop.trf.xlu0
      %781 = vxpose.xlu0.b32.start [1/16] %v744, 128
      %782 = vxpose.xlu0.b32.cont [2/16] %v746, 128
      %783 = vxpose.xlu0.b32.cont [3/16] %v748, 128
      %784 = vxpose.xlu0.b32.cont [4/16] 0.0, 128
      %785 = vxpose.xlu0.b32.cont [5/16] 0.0, 128
      %786 = vxpose.xlu0.b32.cont [6/16] 0.0, 128
      %787 = vxpose.xlu0.b32.cont [7/16] 0.0, 128
      %788 = vxpose.xlu0.b32.cont [8/16] 0.0, 128
      %789 = vxpose.xlu0.b32.cont [9/16] 0.0, 128
      %790 = vxpose.xlu0.b32.cont [10/16] 0.0, 128
      %791 = vxpose.xlu0.b32.cont [11/16] 0.0, 128
      %792 = vxpose.xlu0.b32.cont [12/16] 0.0, 128
      %793 = vxpose.xlu0.b32.cont [13/16] 0.0, 128
      %794 = vxpose.xlu0.b32.cont [14/16] 0.0, 128
      %795 = vxpose.xlu0.b32.cont [15/16] 0.0, 128
      %796 = vxpose.xlu0.b32.end [16/16] 0.0, 128
      %v797 = vpop.trf.xlu0
      %v798 = vpop.trf.xlu0
      %v799 = vpop.trf.xlu0
      %v800 = vpop.trf.xlu0
      %v801 = vpop.trf.xlu0
      %v802 = vpop.trf.xlu0
      %v803 = vpop.trf.xlu0
      %v804 = vpop.trf.xlu0
      %v805 = vpop.trf.xlu0
      %v806 = vpop.trf.xlu0
      %v807 = vpop.trf.xlu0
      %v808 = vpop.trf.xlu0
      %v809 = vpop.trf.xlu0
      %v810 = vpop.trf.xlu0
      %v811 = vpop.trf.xlu0
      %v812 = vpop.trf.xlu0
      %813 = vst.msk [vmem:[%s226] sm:$0xff] %vm316, %v765
      %814 = vst.msk [vmem:[%s226 + $0x8] sm:$0xff] %vm316, %v766
      %815 = vst.msk [vmem:[%s226 + $0x10] sm:$0xff] %vm316, %v767
      %816 = vst.msk [vmem:[%s226 + $0x18] sm:$0xff] %vm316, %v768
      %817 = vst.msk [vmem:[%s226 + $0x20] sm:$0xff] %vm316, %v769
      %818 = vst.msk [vmem:[%s226 + $0x28] sm:$0xff] %vm316, %v770
      %819 = vst.msk [vmem:[%s226 + $0x30] sm:$0xff] %vm316, %v771
      %820 = vst.msk [vmem:[%s226 + $0x38] sm:$0xff] %vm316, %v772
      %821 = vst.msk [vmem:[%s226 + $0x40] sm:$0xff] %vm316, %v773
      %822 = vst.msk [vmem:[%s226 + $0x48] sm:$0xff] %vm316, %v774
      %823 = vst.msk [vmem:[%s226 + $0x50] sm:$0xff] %vm316, %v775
      %824 = vst.msk [vmem:[%s226 + $0x58] sm:$0xff] %vm316, %v776
      %825 = vst.msk [vmem:[%s226 + $0x60] sm:$0xff] %vm316, %v777
      %826 = vst.msk [vmem:[%s226 + $0x68] sm:$0xff] %vm316, %v778
      %827 = vst.msk [vmem:[%s226 + $0x70] sm:$0xff] %vm316, %v779
      %828 = vst.msk [vmem:[%s226 + $0x78] sm:$0xff] %vm316, %v780
      %829 = vst.msk [vmem:[%s226 + $0x80] sm:$0xff] %vm316, %v797
      %830 = vst.msk [vmem:[%s226 + $0x88] sm:$0xff] %vm316, %v798
      %831 = vst.msk [vmem:[%s226 + $0x90] sm:$0xff] %vm316, %v799
      %832 = vst.msk [vmem:[%s226 + $0x98] sm:$0xff] %vm316, %v800
      %833 = vst.msk [vmem:[%s226 + $0xa0] sm:$0xff] %vm316, %v801
      %834 = vst.msk [vmem:[%s226 + $0xa8] sm:$0xff] %vm316, %v802
      %835 = vst.msk [vmem:[%s226 + $0xb0] sm:$0xff] %vm316, %v803
      %836 = vst.msk [vmem:[%s226 + $0xb8] sm:$0xff] %vm316, %v804
      %837 = vst.msk [vmem:[%s226 + $0xc0] sm:$0xff] %vm316, %v805
      %838 = vst.msk [vmem:[%s226 + $0xc8] sm:$0xff] %vm316, %v806
      %839 = vst.msk [vmem:[%s226 + $0xd0] sm:$0xff] %vm316, %v807
      %840 = vst.msk [vmem:[%s226 + $0xd8] sm:$0xff] %vm316, %v808
      %841 = vst.msk [vmem:[%s226 + $0xe0] sm:$0xff] %vm316, %v809
      %842 = vst.msk [vmem:[%s226 + $0xe8] sm:$0xff] %vm316, %v810
      %843 = vst.msk [vmem:[%s226 + $0xf0] sm:$0xff] %vm316, %v811
      %844 = vst.msk [vmem:[%s226 + $0xf8] sm:$0xff] %vm316, %v812
      %s845 = smul.u32 32, %s16
      %p846 = scmp.lt.s32.totalorder %s845, 63
      %s847 = scalar_select %p846, %s845, 63
      %s848 = smul.addr %s847, 8
      %s849 = scalar_lea.vmem %s5, %s848
      // Predicated region
      $region41: #{tpu_custom_call.1} parent=39 // pred_check
        %p850 = pneg %p144
      $region42: #{tpu_custom_call.1} parent=39 // pred_check_branch
        %852 = sbr.rel (%p850) target = $region44
      $region43: #{tpu_custom_call.1} parent=39 // pred_region
        %s853 = smul.u32 32, %s16
      $region44: #{tpu_custom_call.1} parent=39 // pred_fallthru
        _
    $region40: #{tpu_custom_call.1} parent=5 // pred_fallthru
      _
    %p854 = scmp.le.s32.totalorder 2, %s11
    // Predicated region
    $region45: #{tpu_custom_call.1} parent=5 // pred_check
      %p855 = pneg %p854
    $region46: #{tpu_custom_call.1} parent=5 // pred_check_branch
      %857 = sbr.rel (%p855) target = $region48
    $region47: #{tpu_custom_call.1} parent=5 // pred_region
      %s858 = ssub.s32 %s11, 2
      // Predicated region
      $region49: #{tpu_custom_call.1} parent=47 // pred_check
        %p859 = pneg %p150
      $region50: #{tpu_custom_call.1} parent=47 // pred_check_branch
        %861 = sbr.rel (%p859) target = $region52
      $region51: #{tpu_custom_call.1} parent=47 // pred_region
        %s862 = smul.u32 32, %s17
        %p863 = scmp.lt.s32.totalorder %s862, 63
        %s864 = scalar_select %p863, %s862, 63
        %s865 = smul.addr %s864, 8
        %s866 = scalar_lea.vmem %s5, %s865
      $region52: #{tpu_custom_call.1} parent=47 // pred_fallthru
        _
    $region48: #{tpu_custom_call.1} parent=5 // pred_fallthru
      _
  $region6: #{tpu_custom_call.1} parent=0 // loop_footer
    %s15 = sadd.s32 1, %s11
  $region7: #{tpu_custom_call.1} parent=0 // loop_footer_branch
    %10 = sbr.rel target = $region3
  $region8: #{tpu_custom_call.1} parent=0 // loop_exit
    _

</llo_original>
